<compile_context>
chip_gen: v6e
topology: v6e:2x2x1
jax: 0.10.0
libtpu: 0.0.40
codegen_flags: <defaults>
</compile_context>

<pallas_src>
import jax
import jax.numpy as jnp
from jax.experimental import pallas as pl
from jax.experimental.pallas import tpu as pltpu


def _sky_feat_kernel(rays_ref, zproj_ref, w1_ref, w2_ref, b2_ref, feat_ref):
    """Grouped sky decoder tile: G rays per sublane row, lane-dense output.

    rays_ref : (1, tg, G*9)        G consecutive rays per row (raw, all 9 cols).
    zproj_ref: (1, 1, G*hidden)    per-batch (z @ W1z + b1), tiled G times.
    w1_ref   : (G*9, G*hidden) f32 block-diag; nonzero only on view_dir cols.
    w2_ref   : (G*hidden, G*F) bf16 == kron(I_G, W2).
    b2_ref   : (1, G*F) f32
    feat_ref : (1, tg, G*F)        row g holds feat of rays G*g .. G*g+G-1.
    """
    rg = rays_ref[0].astype(jnp.float32)                           # (tg, G*9)
    h = jnp.dot(rg, w1_ref[...], preferred_element_type=jnp.float32)
    h = jnp.maximum(h + zproj_ref[0], 0.0)                         # (tg, G*hidden)
    feat = jnp.dot(h.astype(jnp.bfloat16), w2_ref[...],
                   preferred_element_type=jnp.float32) + b2_ref[...]
    feat_ref[0] = feat.astype(feat_ref.dtype)


def _pick_row_tile(hw, requested, group):
    """Largest tm <= requested that divides hw with (tm/group) % 8 == 0."""
    step = 8 * group
    req = min(requested, hw)
    req -= req % step
    for t in range(req, 0, -step):
        if hw % t == 0:
            return t
    return None


def sky_ray_marcher_forward(z, rays, *, z_far, params, tm=4096,
                            feat_dtype=jnp.bfloat16):
    """Pallas equivalent of skyRayMarcher.forward.

    Args:
      z:      (B, z_dim) latent code.
      rays:   (B, H, W, 9) with [rays_o(3), rays_d(3), view_dir(3)] last axis.
      z_far:  scalar far plane (render_option.z_far).
      params: dict with w1v (3,Hd), w1z (z_dim,Hd), b1 (1,Hd), w2 (Hd,F), b2 (1,F).
      tm:     requested rays per grid step (auto-clamped to a divisor of H*W).
      feat_dtype: output dtype for feat (bf16 halves the dominant HBM stream).
    Returns dict matching the PyTorch sky_sample dict.
    """
    B, H, W, nray = rays.shape
    assert nray == 9
    hidden = params["w1v"].shape[-1]
    feat_dim = params["w2"].shape[-1]
    HW = H * W

    # Rays packed per output row so the feat store is 128-lane dense.
    G = 128 // feat_dim if (feat_dim <= 128 and 128 % feat_dim == 0) else 1

    tile = _pick_row_tile(HW, tm, G)
    if tile is None:
        # TODO(synk): pad H*W with a masked tail for sizes with no 8*G-aligned divisor.
        raise ValueError(f"H*W={HW} needs a divisor that is a multiple of {8 * G}")
    tg = tile // G              # grouped rows per grid step
    gpb = HW // tile            # grid steps per batch element

    # Grouped view of rays: G consecutive rays per row.  Pure metadata reshape
    # (contiguous buffer), no HBM pass, no dtype cast here.
    # TODO(synk): have the upstream producer emit view_dir as its own contiguous
    # tensor to cut this input stream 3x (we still DMA rays_o/rays_d and zero
    # them out through W1's block structure).
    rays_g = rays.reshape(B, HW // G, G * nray)

    f32 = jnp.float32
    w1v = params["w1v"].astype(f32)
    w1z = params["w1z"].astype(f32)
    b1 = params["b1"].astype(f32)
    w2 = params["w2"].astype(f32)
    b2 = params["b2"].astype(f32)

    # Hoisted per-batch latent projection, tiled across the G-ray group.
    zproj = z.astype(f32) @ w1z + b1                                # (B, hidden)
    zproj_big = jnp.tile(zproj, (1, G)).reshape(B, 1, G * hidden)

    # Block weights (tiny, built once at trace time):
    #   W1_big[k*9+6+d, k*hidden+c] = w1v[d, c]   (zeros elsewhere -> rays_o/d dead)
    #   W2_big = kron(I_G, W2)
    w1_big = jnp.zeros((G * nray, G * hidden), f32)
    for k in range(G):
        w1_big = w1_big.at[k * nray + 6:k * nray + 9,
                           k * hidden:(k + 1) * hidden].set(w1v)
    w2_big = jnp.kron(jnp.eye(G, dtype=f32), w2).astype(jnp.bfloat16)
    b2_big = jnp.tile(b2, (1, G))                                    # (1, G*F)

    grid_spec = pltpu.PrefetchScalarGridSpec(
        num_scalar_prefetch=0,
        grid=(B, gpb),
        in_specs=[
            pl.BlockSpec((1, tg, G * nray), lambda b, j: (b, j, 0)),
            pl.BlockSpec((1, 1, G * hidden), lambda b, j: (b, 0, 0)),
            pl.BlockSpec((G * nray, G * hidden), lambda b, j: (0, 0)),
            pl.BlockSpec((G * hidden, G * feat_dim), lambda b, j: (0, 0)),
            pl.BlockSpec((1, G * feat_dim), lambda b, j: (0, 0)),
        ],
        out_specs=pl.BlockSpec((1, tg, G * feat_dim), lambda b, j: (b, j, 0)),
    )

    feat_g = pl.pallas_call(
        _sky_feat_kernel,
        out_shape=jax.ShapeDtypeStruct((B, HW // G, G * feat_dim), feat_dtype),
        grid_spec=grid_spec,
        compiler_params=pltpu.CompilerParams(
            dimension_semantics=("parallel", "parallel")),
    )(rays_g, zproj_big, w1_big, w2_big, b2_big)

    # (B, HW/G, G*F) -> (B, HW, 1, F): contiguous row-major reshape (view only).
    feat = feat_g.reshape(B, HW, 1, feat_dim)

    # Constant side outputs (exact PyTorch semantics), pure XLA broadcasts.
    # TODO(synk): keep these symbolic / fuse into the consumer to avoid writing
    # ~16 B/pixel of constants to HBM.
    sky_sample = {
        "sigma": jnp.full((B, HW, 1), 100.0, f32),
        "feat": feat,
        "scope": jnp.ones((B, H, W, 1), f32),
        "depth": jnp.full((B, HW, 1), float(z_far), f32),
        "semantic": jnp.full((B, HW, 1), 23.0, f32),
    }
    return sky_sample


def _reference(z, rays, z_far, params):
    B, H, W, _ = rays.shape
    r = rays.reshape(B, H * W, 9)
    rays_o, rays_d, view_dir = r[..., 0:3], r[..., 3:6], r[..., 6:9]
    t = jnp.ones((B, H * W, 1), jnp.float32) * z_far
    p = rays_o + rays_d * t
    zb = jnp.broadcast_to(z[:, None, :], (B, H * W, z.shape[-1]))
    h = jnp.maximum(view_dir @ params["w1v"] + zb @ params["w1z"] + params["b1"], 0.0)
    feat = h @ params["w2"] + params["b2"]
    y = p[..., 1, None]
    scope = jnp.ones_like(y)
    sigma = (scope * 100.0).reshape(B, H * W, 1)
    return {
        "sigma": sigma,
        "feat": feat.reshape(B, H * W, 1, -1),
        "scope": scope.reshape(B, H, W, 1),
        "depth": t,
        "semantic": jnp.ones_like(sigma) * 23.0,
    }


if __name__ == "__main__":
    B, H, W = 2, 16, 16
    z_dim, hidden, feat_dim = 32, 64, 32
    z_far = 1000.0

    key = jax.random.PRNGKey(0)
    k_rays, k_z, k_w1v, k_w1z, k_b1, k_w2, k_b2 = jax.random.split(key, 7)

    rays = jax.random.normal(k_rays, (B, H, W, 9), jnp.float32)
    z = jax.random.normal(k_z, (B, z_dim), jnp.float32)

    params = {
        "w1v": jax.random.normal(k_w1v, (3, hidden), jnp.float32) * 0.1,
        "w1z": jax.random.normal(k_w1z, (z_dim, hidden), jnp.float32) * 0.1,
        "b1": jax.random.normal(k_b1, (1, hidden), jnp.float32) * 0.01,
        "w2": jax.random.normal(k_w2, (hidden, feat_dim), jnp.float32) * 0.1,
        "b2": jax.random.normal(k_b2, (1, feat_dim), jnp.float32) * 0.01,
    }

    out = sky_ray_marcher_forward(z, rays, z_far=z_far, params=params)
    out = jax.tree_util.tree_map(jax.block_until_ready, out)

    ref = _reference(z, rays, z_far, params)
    for k in ("sigma", "feat", "scope", "depth", "semantic"):
        assert out[k].shape == ref[k].shape, (k, out[k].shape, ref[k].shape)
        assert jnp.allclose(out[k].astype(jnp.float32), ref[k],
                            rtol=2e-2, atol=2e-2), k

    print("KERNEL_OK")
</pallas_src>

<mosaic_0001>
module attributes {stable_mosaic.version = 11 : i64} {
  func.func @_sky_feat_kernel(%arg0: i32, %arg1: i32, %arg2: memref<1x64x36xf32, #tpu.memory_space<vmem>>, %arg3: memref<1x1x256xf32, #tpu.memory_space<vmem>>, %arg4: memref<36x256xf32, #tpu.memory_space<vmem>>, %arg5: memref<256x128xbf16, #tpu.memory_space<vmem>>, %arg6: memref<1x128xf32, #tpu.memory_space<vmem>>, %arg7: memref<1x64x128xbf16, #tpu.memory_space<vmem>>) attributes {dimension_semantics = [#tpu.dimension_semantics<parallel>, #tpu.dimension_semantics<parallel>], iteration_bounds = array<i64: 2, 1>, scalar_prefetch = 0 : i64, scratch_operands = 0 : i64, tpu.core_type = #tpu.core_type<tc>, window_params = [{transform_indices = @transform_0, window_bounds = array<i64: 1, 64, 36>}, {transform_indices = @transform_1, window_bounds = array<i64: 1, 1, 256>}, {pipeline_mode = #tpu.pipeline_mode<synchronous>, transform_indices = @transform_2, window_bounds = array<i64: 36, 256>}, {pipeline_mode = #tpu.pipeline_mode<synchronous>, transform_indices = @transform_3, window_bounds = array<i64: 256, 128>}, {pipeline_mode = #tpu.pipeline_mode<synchronous>, transform_indices = @transform_4, window_bounds = array<i64: 1, 128>}, {transform_indices = @transform_5, window_bounds = array<i64: 1, 64, 128>}]} {
    %c0 = arith.constant 0 : index
    %c0_0 = arith.constant 0 : index
    %c0_1 = arith.constant 0 : index
    %0 = vector.load %arg2[%c0, %c0_0, %c0_1] : memref<1x64x36xf32, #tpu.memory_space<vmem>>, vector<1x64x36xf32>
    %1 = vector.shape_cast %0 : vector<1x64x36xf32> to vector<64x36xf32>
    %c0_2 = arith.constant 0 : index
    %c0_3 = arith.constant 0 : index
    %2 = vector.load %arg4[%c0_2, %c0_3] : memref<36x256xf32, #tpu.memory_space<vmem>>, vector<36x256xf32>
    %cst = arith.constant dense<0.000000e+00> : vector<64x256xf32>
    %3 = tpu.matmul %1, %2, %cst {dimension_numbers = #tpu.dot_dimension_numbers<[1], [0], [0], [1], [0, 0, 1, 1], [], []>} : vector<64x36xf32>, vector<36x256xf32>, vector<64x256xf32> -> vector<64x256xf32>
    %c0_4 = arith.constant 0 : index
    %c0_5 = arith.constant 0 : index
    %c0_6 = arith.constant 0 : index
    %4 = vector.load %arg3[%c0_4, %c0_5, %c0_6] : memref<1x1x256xf32, #tpu.memory_space<vmem>>, vector<1x1x256xf32>
    %5 = vector.shape_cast %4 : vector<1x1x256xf32> to vector<1x256xf32>
    %6 = vector.broadcast %5 : vector<1x256xf32> to vector<64x256xf32>
    %7 = arith.addf %3, %6 : vector<64x256xf32>
    %cst_7 = arith.constant 0.000000e+00 : f32
    %8 = vector.broadcast %cst_7 : f32 to vector<64x256xf32>
    %9 = arith.maximumf %7, %8 : vector<64x256xf32>
    %10 = arith.truncf %9 : vector<64x256xf32> to vector<64x256xbf16>
    %c0_8 = arith.constant 0 : index
    %c0_9 = arith.constant 0 : index
    %11 = vector.load %arg5[%c0_8, %c0_9] : memref<256x128xbf16, #tpu.memory_space<vmem>>, vector<256x128xbf16>
    %cst_10 = arith.constant dense<0.000000e+00> : vector<64x128xf32>
    %12 = tpu.matmul %10, %11, %cst_10 {dimension_numbers = #tpu.dot_dimension_numbers<[1], [0], [0], [1], [0, 0, 1, 1], [], []>} : vector<64x256xbf16>, vector<256x128xbf16>, vector<64x128xf32> -> vector<64x128xf32>
    %c0_11 = arith.constant 0 : index
    %c0_12 = arith.constant 0 : index
    %13 = vector.load %arg6[%c0_11, %c0_12] : memref<1x128xf32, #tpu.memory_space<vmem>>, vector<1x128xf32>
    %14 = vector.broadcast %13 : vector<1x128xf32> to vector<64x128xf32>
    %15 = arith.addf %12, %14 : vector<64x128xf32>
    %16 = arith.truncf %15 : vector<64x128xf32> to vector<64x128xbf16>
    %c0_13 = arith.constant 0 : index
    %c0_14 = arith.constant 0 : index
    %c0_15 = arith.constant 0 : index
    %17 = vector.load %arg7[%c0_13, %c0_14, %c0_15] : memref<1x64x128xbf16, #tpu.memory_space<vmem>>, vector<1x64x128xbf16>
    %18 = vector.shape_cast %17 : vector<1x64x128xbf16> to vector<64x128xbf16>
    %19 = vector.shape_cast %16 : vector<64x128xbf16> to vector<1x64x128xbf16>
    tpu.vector_store %arg7[%c0_13, %c0_14, %c0_15], %19 {strides = array<i32>} : memref<1x64x128xbf16, #tpu.memory_space<vmem>>, vector<1x64x128xbf16>,
    return
  }
  func.func @transform_0(%arg0: i32, %arg1: i32) -> (i32, i32, i32) {
    %c0_i32 = arith.constant 0 : i32
    %c0_i32_0 = arith.constant 0 : i32
    return %arg0, %arg1, %c0_i32 : i32, i32, i32
  }
  func.func @transform_1(%arg0: i32, %arg1: i32) -> (i32, i32, i32) {
    %c0_i32 = arith.constant 0 : i32
    %c0_i32_0 = arith.constant 0 : i32
    %c0_i32_1 = arith.constant 0 : i32
    return %arg0, %c0_i32, %c0_i32_0 : i32, i32, i32
  }
  func.func @transform_2(%arg0: i32, %arg1: i32) -> (i32, i32) {
    %c0_i32 = arith.constant 0 : i32
    %c0_i32_0 = arith.constant 0 : i32
    %c0_i32_1 = arith.constant 0 : i32
    return %c0_i32, %c0_i32_0 : i32, i32
  }
  func.func @transform_3(%arg0: i32, %arg1: i32) -> (i32, i32) {
    %c0_i32 = arith.constant 0 : i32
    %c0_i32_0 = arith.constant 0 : i32
    %c0_i32_1 = arith.constant 0 : i32
    return %c0_i32, %c0_i32_0 : i32, i32
  }
  func.func @transform_4(%arg0: i32, %arg1: i32) -> (i32, i32) {
    %c0_i32 = arith.constant 0 : i32
    %c0_i32_0 = arith.constant 0 : i32
    %c0_i32_1 = arith.constant 0 : i32
    return %c0_i32, %c0_i32_0 : i32, i32
  }
  func.func @transform_5(%arg0: i32, %arg1: i32) -> (i32, i32, i32) {
    %c0_i32 = arith.constant 0 : i32
    %c0_i32_0 = arith.constant 0 : i32
    return %arg0, %arg1, %c0_i32 : i32, i32, i32
  }
}

</mosaic_0001>

<llo_original>
// kernel: tpu_custom_call.1
$region0: #{tpu_custom_call.1}
  #allocation0 [shape = 'u32[]', space=smem, size = 0x4, offset = 0x4, fixed_abs, tag = 'smem constant byte address 0x4 - core index']
  #allocation1 [shape = 'u32[144,128]{1,0:T(1,128)}', space=vmem, size = 0x12000, scoped, tag = 'internal scratch']
  %s0 = inlined_call_operand.vmem [shape: f32[2,64,36], index: 0, kind: input, shape index: {}]
  %s1 = inlined_call_operand.vmem [shape: f32[2,1,256], index: 1, kind: input, shape index: {}]
  %s2 = inlined_call_operand.hbm [shape: f32[36,256], index: 2, kind: input, shape index: {}]
  %s3 = inlined_call_operand.vmem [shape: bf16[256,128], index: 3, kind: input, shape index: {}]
  %s4 = inlined_call_operand.vmem [shape: f32[1,128], index: 4, kind: input, shape index: {}]
  %s5 = inlined_call_operand.hbm [shape: bf16[2,64,128], index: 5, kind: output, shape index: {}]
  %s6 = sld [smem:[#allocation0]]
  $region57: #{tpu_custom_call.1} parent=0
    _
  %s8 = ssub.s32 1, %s6
  %s9 = scalar_select 0, %s8, %s6
  $region1: #{tpu_custom_call.1} parent=0
    #allocation2 [shape = 'u8[40960]{0}', space=vmem, size = 0xa000, scoped, tag = 'input window, operand 2, single buffered']
    #allocation3 [shape = 's32[2]{0}', space=sflag, size = 0x8, scoped, tag = 'scoped memory for tpu_custom_call.1']
    #allocation4 [shape = 's32[2]{0}', space=sflag, size = 0x8, scoped, tag = 'scoped memory for tpu_custom_call.1']
    #allocation5 [shape = 'u8[32768]{0}', space=vmem, size = 0x8000, scoped, tag = 'output window, operand 0']
    %10 = vsyncpa [#allocation3], 0
    %11 = vsyncpa [#allocation4], 0
    %s12 = scalar_lea.sflag [#allocation4], 1
    %13 = vsyncpa %s12, 0
    loop: start=0, step=1, limit=4
    $region2: #{tpu_custom_call.1} parent=1 // loop_pre_header
      _
    $region3: #{tpu_custom_call.1} parent=1 // loop_header
      %s15 = sphi 0, %s19
      %p16 = scmp.ge.s32.totalorder %s15, 4
      %s22 = sphi 0, %s34
      %s23 = sphi 0, %s30
      %s24 = sphi 0, %s22
      %s25 = sphi 0, %s23
      %s26 = sphi 0, %s24
      %s27 = sphi 0, %s25
      %s39 = sphi 0, %s41
      %s42 = sphi 0, %s39
      %s43 = sphi 0, %s42
      %s59 = sphi 0, %s43
      %s65 = sphi 0, %s67
      %s68 = sphi 0, %s65
      %s69 = sphi 0, %s68
      %s85 = sphi 0, %s69
      %s89 = sphi 0, %s89
      %s91 = sphi 0, %s89
      %s92 = sphi 0, %s91
      %s106 = sphi 0, %s92
      %s110 = sphi 0, %s110
      %s112 = sphi 0, %s110
      %s113 = sphi 0, %s112
      %s127 = sphi 0, %s113
      %s131 = sphi 0, %s131
      %s133 = sphi 0, %s131
      %s134 = sphi 0, %s133
      %s148 = sphi 0, %s134
      %s156 = sphi 0, %s158
      %s159 = sphi 0, %s156
      %s160 = sphi 0, %s159
      %s176 = sphi 0, %s160
    $region4: #{tpu_custom_call.1} parent=1 // loop_header_branch
      %18 = sbr.rel (%p16) target = $region8
    $region5: #{tpu_custom_call.1} parent=1 // loop_body
      %s20 = ssub.s32 %s15, 1
      %s21 = ssub.s32 %s15, 2
      %s28 = sadd.s32 1, %s23
      %p29 = scmp.ge.s32.totalorder %s28, 1
      %s30 = scalar_select %p29, 0, %s28
      %s31 = sadd.s32 1, %s22
      %s32 = scalar_select %p29, %s31, %s22
      %p33 = scmp.ge.s32.totalorder %s32, 2
      %s34 = scalar_select %p33, 0, %s32
      %s35 = ssub.s32 %s22, %s34
      %s36 = ssub.s32 %s23, %s30
      %s37 = sor.u32 %s35, %s36
      %p38 = scmp.eq.s32.totalorder %s37, 0
      %s40 = sadd.s32 %s39, 1
      %s41 = scalar_select %p38, %s39, %s40
      %p44 = pneg %p38
      %p45 = scmp.eq.s32.totalorder %s15, 1
      %p46 = por %p44, %p45
      %p47 = scmp.ne.s32.totalorder %s39, %s42
      %p48 = scmp.eq.s32.totalorder %s15, 0
      %p49 = por %p47, %p48
      %p50 = scmp.ne.s32.totalorder %s39, %s42
      %p51 = scmp.eq.s32.totalorder %s20, 1
      %p52 = por %p50, %p51
      %p53 = scmp.ne.s32.totalorder %s42, %s43
      %p54 = scmp.eq.s32.totalorder %s20, 0
      %p55 = por %p53, %p54
      %p56 = scmp.ne.s32.totalorder %s42, %s43
      %p57 = scmp.eq.s32.totalorder %s21, 1
      %p58 = por %p56, %p57
      %p60 = scmp.ne.s32.totalorder %s43, %s59
      %p61 = scmp.eq.s32.totalorder %s21, 0
      %p62 = por %p60, %p61
      %s63 = ssub.s32 %s22, %s34
      %p64 = scmp.eq.s32.totalorder %s63, 0
      %s66 = sadd.s32 %s65, 1
      %s67 = scalar_select %p64, %s65, %s66
      %p70 = pneg %p64
      %p71 = scmp.eq.s32.totalorder %s15, 1
      %p72 = por %p70, %p71
      %p73 = scmp.ne.s32.totalorder %s65, %s68
      %p74 = scmp.eq.s32.totalorder %s15, 0
      %p75 = por %p73, %p74
      %p76 = scmp.ne.s32.totalorder %s65, %s68
      %p77 = scmp.eq.s32.totalorder %s20, 1
      %p78 = por %p76, %p77
      %p79 = scmp.ne.s32.totalorder %s68, %s69
      %p80 = scmp.eq.s32.totalorder %s20, 0
      %p81 = por %p79, %p80
      %p82 = scmp.ne.s32.totalorder %s68, %s69
      %p83 = scmp.eq.s32.totalorder %s21, 1
      %p84 = por %p82, %p83
      %p86 = scmp.ne.s32.totalorder %s69, %s85
      %p87 = scmp.eq.s32.totalorder %s21, 0
      %p88 = por %p86, %p87
      %s90 = sadd.s32 %s89, 1
      %p93 = scmp.eq.s32.totalorder %s15, 1
      %p94 = scmp.ne.s32.totalorder %s89, %s91
      %p95 = scmp.eq.s32.totalorder %s15, 0
      %p96 = por %p94, %p95
      %p97 = scmp.ne.s32.totalorder %s89, %s91
      %p98 = scmp.eq.s32.totalorder %s20, 1
      %p99 = por %p97, %p98
      %p100 = scmp.ne.s32.totalorder %s91, %s92
      %p101 = scmp.eq.s32.totalorder %s20, 0
      %p102 = por %p100, %p101
      %p103 = scmp.ne.s32.totalorder %s91, %s92
      %p104 = scmp.eq.s32.totalorder %s21, 1
      %p105 = por %p103, %p104
      %p107 = scmp.ne.s32.totalorder %s92, %s106
      %p108 = scmp.eq.s32.totalorder %s21, 0
      %p109 = por %p107, %p108
      %s111 = sadd.s32 %s110, 1
      %p114 = scmp.eq.s32.totalorder %s15, 1
      %p115 = scmp.ne.s32.totalorder %s110, %s112
      %p116 = scmp.eq.s32.totalorder %s15, 0
      %p117 = por %p115, %p116
      %p118 = scmp.ne.s32.totalorder %s110, %s112
      %p119 = scmp.eq.s32.totalorder %s20, 1
      %p120 = por %p118, %p119
      %p121 = scmp.ne.s32.totalorder %s112, %s113
      %p122 = scmp.eq.s32.totalorder %s20, 0
      %p123 = por %p121, %p122
      %p124 = scmp.ne.s32.totalorder %s112, %s113
      %p125 = scmp.eq.s32.totalorder %s21, 1
      %p126 = por %p124, %p125
      %p128 = scmp.ne.s32.totalorder %s113, %s127
      %p129 = scmp.eq.s32.totalorder %s21, 0
      %p130 = por %p128, %p129
      %s132 = sadd.s32 %s131, 1
      %p135 = scmp.eq.s32.totalorder %s15, 1
      %p136 = scmp.ne.s32.totalorder %s131, %s133
      %p137 = scmp.eq.s32.totalorder %s15, 0
      %p138 = por %p136, %p137
      %p139 = scmp.ne.s32.totalorder %s131, %s133
      %p140 = scmp.eq.s32.totalorder %s20, 1
      %p141 = por %p139, %p140
      %p142 = scmp.ne.s32.totalorder %s133, %s134
      %p143 = scmp.eq.s32.totalorder %s20, 0
      %p144 = por %p142, %p143
      %p145 = scmp.ne.s32.totalorder %s133, %s134
      %p146 = scmp.eq.s32.totalorder %s21, 1
      %p147 = por %p145, %p146
      %p149 = scmp.ne.s32.totalorder %s134, %s148
      %p150 = scmp.eq.s32.totalorder %s21, 0
      %p151 = por %p149, %p150
      %s152 = ssub.s32 %s22, %s34
      %s153 = ssub.s32 %s23, %s30
      %s154 = sor.u32 %s152, %s153
      %p155 = scmp.eq.s32.totalorder %s154, 0
      %s157 = sadd.s32 %s156, 1
      %s158 = scalar_select %p155, %s156, %s157
      %p161 = pneg %p155
      %p162 = scmp.eq.s32.totalorder %s15, 1
      %p163 = por %p161, %p162
      %p164 = scmp.ne.s32.totalorder %s156, %s159
      %p165 = scmp.eq.s32.totalorder %s15, 0
      %p166 = por %p164, %p165
      %p167 = scmp.ne.s32.totalorder %s156, %s159
      %p168 = scmp.eq.s32.totalorder %s20, 1
      %p169 = por %p167, %p168
      %p170 = scmp.ne.s32.totalorder %s159, %s160
      %p171 = scmp.eq.s32.totalorder %s20, 0
      %p172 = por %p170, %p171
      %p173 = scmp.ne.s32.totalorder %s159, %s160
      %p174 = scmp.eq.s32.totalorder %s21, 1
      %p175 = por %p173, %p174
      %p177 = scmp.ne.s32.totalorder %s160, %s176
      %p178 = scmp.eq.s32.totalorder %s21, 0
      %p179 = por %p177, %p178
      %p180 = scmp.le.s32.totalorder 1, %s15
      %p181 = scmp.lt.s32.totalorder %s15, 3
      %p182 = pnand %p180, %p181
      %p183 = pneg %p182
      // Predicated region
      $region9: #{tpu_custom_call.1} parent=5 // pred_check
        _
      $region10: #{tpu_custom_call.1} parent=5 // pred_check_branch
        %185 = sbr.rel (%p182) target = $region12
      $region11: #{tpu_custom_call.1} parent=5 // pred_region
        %s186 = ssub.s32 %s15, 1
        // Predicated region
        $region13: #{tpu_custom_call.1} parent=11 // pred_check
          %p187 = pneg %p102
        $region14: #{tpu_custom_call.1} parent=11 // pred_check_branch
          %189 = sbr.rel (%p187) target = $region16
        $region15: #{tpu_custom_call.1} parent=11 // pred_region
          %s191 = ssub.s32 1280, 1280
          %192 = vsyncadd [#allocation3], %s191
          %s193 = sshll.u32 [#allocation2], 4
          %s194 = int_to_ptr.vmem [resolvable:$true] %s193
          %199 = dma.hbm_to_vmem [thread:$0]  %s2, 1280, %s194, [#allocation3], 256, 256, 16
        $region16: #{tpu_custom_call.1} parent=11 // pred_fallthru
          _
        // Predicated region
        $region17: #{tpu_custom_call.1} parent=11 // pred_check
          %p200 = pneg %p123
        $region18: #{tpu_custom_call.1} parent=11 // pred_check_branch
          %202 = sbr.rel (%p200) target = $region20
        $region19: #{tpu_custom_call.1} parent=11 // pred_region
          _
        $region20: #{tpu_custom_call.1} parent=11 // pred_fallthru
          _
        // Predicated region
        $region21: #{tpu_custom_call.1} parent=11 // pred_check
          %p203 = pneg %p144
        $region22: #{tpu_custom_call.1} parent=11 // pred_check_branch
          %205 = sbr.rel (%p203) target = $region24
        $region23: #{tpu_custom_call.1} parent=11 // pred_region
          _
        $region24: #{tpu_custom_call.1} parent=11 // pred_fallthru
          _
      $region12: #{tpu_custom_call.1} parent=5 // pred_fallthru
        _
      %p206 = scmp.lt.s32.totalorder %s15, 2
      // Predicated region
      $region25: #{tpu_custom_call.1} parent=5 // pred_check
        %p207 = pneg %p206
      $region26: #{tpu_custom_call.1} parent=5 // pred_check_branch
        %209 = sbr.rel (%p207) target = $region28
      $region27: #{tpu_custom_call.1} parent=5 // pred_region
        // Predicated region
        $region29: #{tpu_custom_call.1} parent=27 // pred_check
          %p210 = pneg %p49
        $region30: #{tpu_custom_call.1} parent=27 // pred_check_branch
          %212 = sbr.rel (%p210) target = $region32
        $region31: #{tpu_custom_call.1} parent=27 // pred_region
          %s213 = smul.u32 8, %s23
          %p214 = scmp.lt.s32.totalorder %s22, 1
          %s215 = scalar_select %p214, %s22, 1
          %p216 = scmp.lt.s32.totalorder %s213, 7
          %s217 = scalar_select %p216, %s213, 7
          %s218 = smul.addr %s215, 8
          %s219 = sadd.s32 %s217, %s218
          %s220 = smul.addr %s219, 8
          %s221 = scalar_lea.vmem %s0, %s220
          %s222 = smul.u32 8, %s23
        $region32: #{tpu_custom_call.1} parent=27 // pred_fallthru
          _
        // Predicated region
        $region33: #{tpu_custom_call.1} parent=27 // pred_check
          %p223 = pneg %p75
        $region34: #{tpu_custom_call.1} parent=27 // pred_check_branch
          %225 = sbr.rel (%p223) target = $region36
        $region35: #{tpu_custom_call.1} parent=27 // pred_region
          %p226 = scmp.lt.s32.totalorder %s22, 1
          %s227 = scalar_select %p226, %s22, 1
          %s228 = smul.addr %s227, 2
          %s229 = scalar_lea.vmem %s1, %s228
        $region36: #{tpu_custom_call.1} parent=27 // pred_fallthru
          _
      $region28: #{tpu_custom_call.1} parent=5 // pred_fallthru
        _
      %p230 = scmp.le.s32.totalorder 1, %s15
      %p231 = scmp.lt.s32.totalorder %s15, 3
      %p232 = pnand %p230, %p231
      %p233 = pneg %p232
      // Predicated region
      $region37: #{tpu_custom_call.1} parent=5 // pred_check
        _
      $region38: #{tpu_custom_call.1} parent=5 // pred_check_branch
        %235 = sbr.rel (%p232) target = $region40
      $region39: #{tpu_custom_call.1} parent=5 // pred_region
        %s236 = ssub.s32 %s15, 1
        // Predicated region
        $region41: #{tpu_custom_call.1} parent=39 // pred_check
          %p237 = pneg %p102
        $region42: #{tpu_custom_call.1} parent=39 // pred_check_branch
          %239 = sbr.rel (%p237) target = $region44
        $region43: #{tpu_custom_call.1} parent=39 // pred_region
          %240 = dma.done [#allocation3], 1280
        $region44: #{tpu_custom_call.1} parent=39 // pred_fallthru
          _
        %s241 = smul.u32 8, %s25
        %p242 = scmp.lt.s32.totalorder %s24, 1
        %s243 = scalar_select %p242, %s24, 1
        %p244 = scmp.lt.s32.totalorder %s241, 7
        %s245 = scalar_select %p244, %s241, 7
        %s246 = smul.addr %s243, 8
        %s247 = sadd.s32 %s245, %s246
        %s248 = smul.addr %s247, 8
        %s249 = scalar_lea.vmem %s0, %s248
        %p250 = pneg %p55
        %p251 = pneg %p52
        %p252 = scmp.lt.s32.totalorder %s24, 1
        %s253 = scalar_select %p252, %s24, 1
        %s254 = smul.addr %s253, 2
        %s255 = scalar_lea.vmem %s1, %s254
        %p256 = pneg %p81
        %p257 = pneg %p78
        %p258 = pneg %p102
        %p259 = pneg %p99
        %p260 = pneg %p123
        %p261 = pneg %p120
        %p262 = pneg %p144
        %p263 = pneg %p141
        %p264 = pneg %p172
        %p265 = pneg %p169
        %s266 = sand.u32 %s159, 1
        %s267 = scalar_lea.sflag [#allocation4], %s266
        %s268 = sand.u32 %s159, 1
        %s269 = smul.addr %s268, 32
        %s270 = scalar_lea.vmem [#allocation5], %s269
        %s271 = smul.u32 8, %s25
        %p272 = scmp.lt.s32.totalorder %s24, 1
        %s273 = scalar_select %p272, %s24, 1
        %p274 = scmp.lt.s32.totalorder %s271, 7
        %s275 = scalar_select %p274, %s271, 7
        %s276 = smul.addr %s273, 8
        %s277 = sadd.s32 %s275, %s276
        %s278 = smul.addr %s277, 8
        %s279 = scalar_lea.vmem %s0, %s278
        %s280 = smul.u32 8, %s25
        %p281 = scmp.lt.s32.totalorder %s24, 1
        %s282 = scalar_select %p281, %s24, 1
        %s283 = smul.addr %s282, 2
        %s284 = scalar_lea.vmem %s1, %s283
        %s285 = smul.u32 8, %s25
        %v287 = vld [vmem:[%s279] sm:$0xff]
        %v288 = vld [vmem:[%s279 + $0x8] sm:$0xff]
        %v289 = vld [vmem:[%s279 + $0x10] sm:$0xff]
        %v290 = vld [vmem:[%s279 + $0x18] sm:$0xff]
        %v291 = vld [vmem:[%s279 + $0x20] sm:$0xff]
        %v292 = vld [vmem:[%s279 + $0x28] sm:$0xff]
        %v293 = vld [vmem:[%s279 + $0x30] sm:$0xff]
        %v294 = vld [vmem:[%s279 + $0x38] sm:$0xff]
        %v295 = vld [vmem:[#allocation2] sm:$0xff]
        %v296 = vld [vmem:[#allocation2 + $0x8] sm:$0xff]
        %v297 = vld [vmem:[#allocation2 + $0x10] sm:$0xff]
        %v298 = vld [vmem:[#allocation2 + $0x18] sm:$0xff]
        %v299 = vld [vmem:[#allocation2 + $0x20] sm:$0xff]
        %v300 = vld [vmem:[#allocation2 + $0x28] sm:$0xff]
        %v301 = vld [vmem:[#allocation2 + $0x30] sm:$0xff]
        %v302 = vld [vmem:[#allocation2 + $0x38] sm:$0xff]
        %v303 = vld [vmem:[#allocation2 + $0x40] sm:$0xf]
        %v304 = vld [vmem:[#allocation2 + $0x48] sm:$0xf]
        %v305 = vld [vmem:[%s284] sm:$0x3]
        %v307 = vlaneseq
        %v308 = vshrl.u32 %v307, 7
        %v309 = vsub.s32 0, %v308
        %v310 = vrot.slane %v305, %v309
        %v311 = vlaneseq
        %v312 = vshrl.u32 %v311, 7
        %v313 = vsub.s32 1, %v312
        %v314 = vrot.slane %v305, %v313
        %vm317 = vcmask 293888
        %v319 = vsel %vm317, %v287, 0
        %v322 = vsel %vm317, %v288, 0
        %v325 = vsel %vm317, %v289, 0
        %v328 = vsel %vm317, %v290, 0
        %v331 = vsel %vm317, %v291, 0
        %v334 = vsel %vm317, %v292, 0
        %v337 = vsel %vm317, %v293, 0
        %v340 = vsel %vm317, %v294, 0
        %vm342 = vcmask 1043456
        %v344 = vsel %vm342, %v303, 0
        %v347 = vsel %vm342, %v304, 0
        %349 = vmatprep.subr.mxu0 0.0
        %350 = vmatpush1.msra.mxu0 0.0
        %351 = vmatprep.subr.mxu0 0.0
        %352 = vmatpush1.msra.mxu0 0.0
        %353 = vmatprep.subr.mxu0 0.0
        %354 = vmatpush1.msra.mxu0 0.0
        %355 = vmatprep.subr.mxu0 0.0
        %356 = vmatpush1.msra.mxu0 0.0
        %357 = vmatprep.subr.mxu0 0.0
        %358 = vmatpush1.msra.mxu0 0.0
        %359 = vmatprep.subr.mxu0 0.0
        %360 = vmatpush1.msra.mxu0 0.0
        %361 = vmatprep.subr.mxu0 0.0
        %362 = vmatpush1.msra.mxu0 0.0
        %363 = vmatprep.subr.mxu0 0.0
        %364 = vmatpush1.msra.mxu0 0.0
        %365 = vmatprep.subr.mxu0 0.0
        %366 = vmatpush1.msra.mxu0 0.0
        %367 = vmatprep.subr.mxu0 0.0
        %368 = vmatpush1.msra.mxu0 0.0
        %369 = vmatprep.subr.mxu0 0.0
        %370 = vmatpush1.msra.mxu0 0.0
        %371 = vmatprep.subr.mxu0 %v347
        %372 = vmatpush1.msra.mxu0 %v344
        %373 = vmatprep.subr.mxu0 %v302
        %374 = vmatpush1.msra.mxu0 %v301
        %375 = vmatprep.subr.mxu0 %v300
        %376 = vmatpush1.msra.mxu0 %v299
        %377 = vmatprep.subr.mxu0 %v298
        %378 = vmatpush1.msra.mxu0 %v297
        %379 = vmatprep.subr.mxu0 %v296
        %380 = vmatpush1.msra.mxu0 %v295
        %381 = vmatprep.subr.mxu0 0.0
        %382 = vmatpush2.msra.mxu0 0.0
        %383 = vmatprep.subr.mxu0 0.0
        %384 = vmatpush2.msra.mxu0 0.0
        %385 = vmatprep.subr.mxu0 0.0
        %386 = vmatpush2.msra.mxu0 0.0
        %387 = vmatprep.subr.mxu0 0.0
        %388 = vmatpush2.msra.mxu0 0.0
        %389 = vmatprep.subr.mxu0 0.0
        %390 = vmatpush2.msra.mxu0 0.0
        %391 = vmatprep.subr.mxu0 0.0
        %392 = vmatpush2.msra.mxu0 0.0
        %393 = vmatprep.subr.mxu0 0.0
        %394 = vmatpush2.msra.mxu0 0.0
        %395 = vmatprep.subr.mxu0 0.0
        %396 = vmatpush2.msra.mxu0 0.0
        %397 = vmatprep.subr.mxu0 0.0
        %398 = vmatpush2.msra.mxu0 0.0
        %399 = vmatprep.subr.mxu0 0.0
        %400 = vmatpush2.msra.mxu0 0.0
        %401 = vmatprep.subr.mxu0 0.0
        %402 = vmatpush2.msra.mxu0 0.0
        %403 = vmatprep.subr.mxu0 0.0
        %404 = vmatpush2.msra.mxu0 0.0
        %405 = vmatprep.subr.mxu0 0.0
        %406 = vmatpush2.msra.mxu0 0.0
        %407 = vmatprep.subr.mxu0 0.0
        %408 = vmatpush2.msra.mxu0 0.0
        %409 = vmatprep.subr.mxu0 0.0
        %410 = vmatpush2.msra.mxu0 0.0
        %411 = vmatprep.subr.mxu0 0.0
        %412 = vmatpush2.msra.mxu0 0.0
        %413 = vmatprep.mubr.f32.mxu0 0.0
        %414 = vmatmul.mubr.f32.gmra.mxu0 %v319
        %v415 = vpop.f32.mrf.mxu0
        %v416 = vadd.f32 %v310, %v415
        %v417 = vpop.f32.mrf.mxu0
        %v418 = vadd.f32 %v314, %v417
        %419 = vmatprep.mubr.f32.mxu0 0.0
        %420 = vmatmul.mubr.f32.gmra.mxu0 %v322
        %v421 = vpop.f32.mrf.mxu0
        %v422 = vadd.f32 %v310, %v421
        %v423 = vpop.f32.mrf.mxu0
        %v424 = vadd.f32 %v314, %v423
        %425 = vmatprep.mubr.f32.mxu0 0.0
        %426 = vmatmul.mubr.f32.gmra.mxu0 %v325
        %v427 = vpop.f32.mrf.mxu0
        %v428 = vadd.f32 %v310, %v427
        %v429 = vpop.f32.mrf.mxu0
        %v430 = vadd.f32 %v314, %v429
        %431 = vmatprep.mubr.f32.mxu0 0.0
        %432 = vmatmul.mubr.f32.gmra.mxu0 %v328
        %v433 = vpop.f32.mrf.mxu0
        %v434 = vadd.f32 %v310, %v433
        %v435 = vpop.f32.mrf.mxu0
        %v436 = vadd.f32 %v314, %v435
        %437 = vmatprep.mubr.f32.mxu0 0.0
        %438 = vmatmul.mubr.f32.gmra.mxu0 %v331
        %v439 = vpop.f32.mrf.mxu0
        %v440 = vadd.f32 %v310, %v439
        %v441 = vpop.f32.mrf.mxu0
        %v442 = vadd.f32 %v314, %v441
        %443 = vmatprep.mubr.f32.mxu0 0.0
        %444 = vmatmul.mubr.f32.gmra.mxu0 %v334
        %v445 = vpop.f32.mrf.mxu0
        %v446 = vadd.f32 %v310, %v445
        %v447 = vpop.f32.mrf.mxu0
        %v448 = vadd.f32 %v314, %v447
        %449 = vmatprep.mubr.f32.mxu0 0.0
        %450 = vmatmul.mubr.f32.gmra.mxu0 %v337
        %v451 = vpop.f32.mrf.mxu0
        %v452 = vadd.f32 %v310, %v451
        %v453 = vpop.f32.mrf.mxu0
        %v454 = vadd.f32 %v314, %v453
        %455 = vmatprep.mubr.f32.mxu0 0.0
        %456 = vmatmul.mubr.f32.gmra.mxu0 %v340
        %v457 = vpop.f32.mrf.mxu0
        %v458 = vadd.f32 %v310, %v457
        %v459 = vpop.f32.mrf.mxu0
        %v460 = vadd.f32 %v314, %v459
        %461 = vdwg.mxu0
        %v462 = vmax.f32 %v416, 0.0
        %v463 = vmax.f32 %v418, 0.0
        %v464 = vmax.f32 %v422, 0.0
        %v465 = vmax.f32 %v424, 0.0
        %v466 = vmax.f32 %v428, 0.0
        %v467 = vmax.f32 %v430, 0.0
        %v468 = vmax.f32 %v434, 0.0
        %v469 = vmax.f32 %v436, 0.0
        %v470 = vmax.f32 %v440, 0.0
        %v471 = vmax.f32 %v442, 0.0
        %v472 = vmax.f32 %v446, 0.0
        %v473 = vmax.f32 %v448, 0.0
        %v474 = vmax.f32 %v452, 0.0
        %v475 = vmax.f32 %v454, 0.0
        %v476 = vmax.f32 %v458, 0.0
        %v477 = vmax.f32 %v460, 0.0
        %v478 = vpack.c.bf16 %v464, %v462
        %v479 = vpack.c.bf16 %v465, %v463
        %v480 = vpack.c.bf16 %v468, %v466
        %v481 = vpack.c.bf16 %v469, %v467
        %v482 = vpack.c.bf16 %v472, %v470
        %v483 = vpack.c.bf16 %v473, %v471
        %v484 = vpack.c.bf16 %v476, %v474
        %v485 = vpack.c.bf16 %v477, %v475
        %v486 = vld [vmem:[%s3] sm:$0xf]
        %v487 = vld [vmem:[%s3 + $0x4] sm:$0xf]
        %v488 = vld [vmem:[%s3 + $0x8] sm:$0xf]
        %v489 = vld [vmem:[%s3 + $0xc] sm:$0xf]
        %v490 = vld [vmem:[%s3 + $0x10] sm:$0xf]
        %v491 = vld [vmem:[%s3 + $0x14] sm:$0xf]
        %v492 = vld [vmem:[%s3 + $0x18] sm:$0xf]
        %v493 = vld [vmem:[%s3 + $0x1c] sm:$0xf]
        %v494 = vld [vmem:[%s3 + $0x20] sm:$0xf]
        %v495 = vld [vmem:[%s3 + $0x24] sm:$0xf]
        %v496 = vld [vmem:[%s3 + $0x28] sm:$0xf]
        %v497 = vld [vmem:[%s3 + $0x2c] sm:$0xf]
        %v498 = vld [vmem:[%s3 + $0x30] sm:$0xf]
        %v499 = vld [vmem:[%s3 + $0x34] sm:$0xf]
        %v500 = vld [vmem:[%s3 + $0x38] sm:$0xf]
        %v501 = vld [vmem:[%s3 + $0x3c] sm:$0xf]
        %v502 = vld [vmem:[%s3 + $0x40] sm:$0xf]
        %v503 = vld [vmem:[%s3 + $0x44] sm:$0xf]
        %v504 = vld [vmem:[%s3 + $0x48] sm:$0xf]
        %v505 = vld [vmem:[%s3 + $0x4c] sm:$0xf]
        %v506 = vld [vmem:[%s3 + $0x50] sm:$0xf]
        %v507 = vld [vmem:[%s3 + $0x54] sm:$0xf]
        %v508 = vld [vmem:[%s3 + $0x58] sm:$0xf]
        %v509 = vld [vmem:[%s3 + $0x5c] sm:$0xf]
        %v510 = vld [vmem:[%s3 + $0x60] sm:$0xf]
        %v511 = vld [vmem:[%s3 + $0x64] sm:$0xf]
        %v512 = vld [vmem:[%s3 + $0x68] sm:$0xf]
        %v513 = vld [vmem:[%s3 + $0x6c] sm:$0xf]
        %v514 = vld [vmem:[%s3 + $0x70] sm:$0xf]
        %v515 = vld [vmem:[%s3 + $0x74] sm:$0xf]
        %v516 = vld [vmem:[%s3 + $0x78] sm:$0xf]
        %v517 = vld [vmem:[%s3 + $0x7c] sm:$0xf]
        %v518 = vld [vmem:[%s4] sm:$0x1]
        %v520 = vlaneseq
        %v521 = vshrl.u32 %v520, 7
        %v522 = vsub.s32 0, %v521
        %v523 = vrot.slane %v518, %v522
        %v557 = vunpack.c.l.b16 %v486
        %v558 = vunpack.c.l.b16 %v487
        %v559 = vunpack.c.l.b16 %v488
        %v560 = vunpack.c.l.b16 %v489
        %v561 = vunpack.c.l.b16 %v490
        %v562 = vunpack.c.l.b16 %v491
        %v563 = vunpack.c.l.b16 %v492
        %v564 = vunpack.c.l.b16 %v493
        %v565 = vunpack.c.l.b16 %v494
        %v566 = vunpack.c.l.b16 %v495
        %v567 = vunpack.c.l.b16 %v496
        %v568 = vunpack.c.l.b16 %v497
        %v569 = vunpack.c.l.b16 %v498
        %v570 = vunpack.c.l.b16 %v499
        %v571 = vunpack.c.l.b16 %v500
        %v572 = vunpack.c.l.b16 %v501
        %v573 = vunpack.c.l.b16 %v502
        %v574 = vunpack.c.l.b16 %v503
        %v575 = vunpack.c.l.b16 %v504
        %v576 = vunpack.c.l.b16 %v505
        %v577 = vunpack.c.l.b16 %v506
        %v578 = vunpack.c.l.b16 %v507
        %v579 = vunpack.c.l.b16 %v508
        %v580 = vunpack.c.l.b16 %v509
        %v581 = vunpack.c.l.b16 %v510
        %v582 = vunpack.c.l.b16 %v511
        %v583 = vunpack.c.l.b16 %v512
        %v584 = vunpack.c.l.b16 %v513
        %v585 = vunpack.c.l.b16 %v514
        %v586 = vunpack.c.l.b16 %v515
        %v587 = vunpack.c.l.b16 %v516
        %v588 = vunpack.c.l.b16 %v517
        %v589 = vpack.c.b16 %v558, %v557
        %v590 = vpack.c.b16 %v560, %v559
        %v591 = vpack.c.b16 %v562, %v561
        %v592 = vpack.c.b16 %v564, %v563
        %v593 = vpack.c.b16 %v566, %v565
        %v594 = vpack.c.b16 %v568, %v567
        %v595 = vpack.c.b16 %v570, %v569
        %v596 = vpack.c.b16 %v572, %v571
        %v597 = vpack.c.b16 %v574, %v573
        %v598 = vpack.c.b16 %v576, %v575
        %v599 = vpack.c.b16 %v578, %v577
        %v600 = vpack.c.b16 %v580, %v579
        %v601 = vpack.c.b16 %v582, %v581
        %v602 = vpack.c.b16 %v584, %v583
        %v603 = vpack.c.b16 %v586, %v585
        %v604 = vpack.c.b16 %v588, %v587
        %621 = vmatprep.subr.bf16.mxu0 0
        %622 = vmatpush1.bf16.msra.mxu0 %v596
        %623 = vmatprep.subr.bf16.mxu0 0
        %624 = vmatpush1.bf16.msra.mxu0 %v595
        %625 = vmatprep.subr.bf16.mxu0 0
        %626 = vmatpush1.bf16.msra.mxu0 %v594
        %627 = vmatprep.subr.bf16.mxu0 0
        %628 = vmatpush1.bf16.msra.mxu0 %v593
        %629 = vmatprep.subr.bf16.mxu0 0
        %630 = vmatpush1.bf16.msra.mxu0 %v592
        %631 = vmatprep.subr.bf16.mxu0 0
        %632 = vmatpush1.bf16.msra.mxu0 %v591
        %633 = vmatprep.subr.bf16.mxu0 0
        %634 = vmatpush1.bf16.msra.mxu0 %v590
        %635 = vmatprep.subr.bf16.mxu0 0
        %636 = vmatpush1.bf16.msra.mxu0 %v589
        %637 = vmatprep.subr.bf16.mxu0 0
        %638 = vmatpush2.bf16.msra.mxu0 %v604
        %639 = vmatprep.subr.bf16.mxu0 0
        %640 = vmatpush2.bf16.msra.mxu0 %v603
        %641 = vmatprep.subr.bf16.mxu0 0
        %642 = vmatpush2.bf16.msra.mxu0 %v602
        %643 = vmatprep.subr.bf16.mxu0 0
        %644 = vmatpush2.bf16.msra.mxu0 %v601
        %645 = vmatprep.subr.bf16.mxu0 0
        %646 = vmatpush2.bf16.msra.mxu0 %v600
        %647 = vmatprep.subr.bf16.mxu0 0
        %648 = vmatpush2.bf16.msra.mxu0 %v599
        %649 = vmatprep.subr.bf16.mxu0 0
        %650 = vmatpush2.bf16.msra.mxu0 %v598
        %651 = vmatprep.subr.bf16.mxu0 0
        %652 = vmatpush2.bf16.msra.mxu0 %v597
        %653 = vmatprep.mubr.bf16.mxu0 %v479
        %654 = vmatmul.mubr.bf16.gmra.mxu0 %v478
        %v655 = vpop.f32.mrf.mxu0
        %v656 = vadd.f32 %v523, %v655
        %v657 = vpop.f32.mrf.mxu0
        %v658 = vpop.f32.mrf.mxu0
        %v659 = vadd.f32 %v523, %v658
        %v660 = vpop.f32.mrf.mxu0
        %661 = vmatprep.mubr.bf16.mxu0 %v481
        %662 = vmatmul.mubr.bf16.gmra.mxu0 %v480
        %v663 = vpop.f32.mrf.mxu0
        %v664 = vadd.f32 %v523, %v663
        %v665 = vpop.f32.mrf.mxu0
        %v666 = vpop.f32.mrf.mxu0
        %v667 = vadd.f32 %v523, %v666
        %v668 = vpop.f32.mrf.mxu0
        %669 = vmatprep.mubr.bf16.mxu0 %v483
        %670 = vmatmul.mubr.bf16.gmra.mxu0 %v482
        %v671 = vpop.f32.mrf.mxu0
        %v672 = vadd.f32 %v523, %v671
        %v673 = vpop.f32.mrf.mxu0
        %v674 = vpop.f32.mrf.mxu0
        %v675 = vadd.f32 %v523, %v674
        %v676 = vpop.f32.mrf.mxu0
        %677 = vmatprep.mubr.bf16.mxu0 %v485
        %678 = vmatmul.mubr.bf16.gmra.mxu0 %v484
        %v679 = vpop.f32.mrf.mxu0
        %v680 = vadd.f32 %v523, %v679
        %v681 = vpop.f32.mrf.mxu0
        %v682 = vpop.f32.mrf.mxu0
        %v683 = vadd.f32 %v523, %v682
        %v684 = vpop.f32.mrf.mxu0
        %685 = vdwg.mxu0
        %v686 = vpack.c.bf16 %v659, %v656
        %v687 = vpack.c.bf16 %v667, %v664
        %v688 = vpack.c.bf16 %v675, %v672
        %v689 = vpack.c.bf16 %v683, %v680
        %v694 = vunpack.c.l.b16 %v686
        %v695 = vunpack.c.h.b16 %v686
        %v696 = vunpack.c.l.b16 %v687
        %v697 = vunpack.c.h.b16 %v687
        %v698 = vunpack.c.l.b16 %v688
        %v699 = vunpack.c.h.b16 %v688
        %v700 = vunpack.c.l.b16 %v689
        %v701 = vunpack.c.h.b16 %v689
        %v702 = vpack.c.b16 %v694, %v694
        %v703 = vpack.c.b16 %v695, %v695
        %v704 = vpack.c.b16 %v696, %v696
        %v705 = vpack.c.b16 %v697, %v697
        %v706 = vpack.c.b16 %v698, %v698
        %v707 = vpack.c.b16 %v699, %v699
        %v708 = vpack.c.b16 %v700, %v700
        %v709 = vpack.c.b16 %v701, %v701
        %718 = vst [vmem:[%s270] sm:$0xf] %v702
        %719 = vst [vmem:[%s270 + $0x4] sm:$0xf] %v703
        %720 = vst [vmem:[%s270 + $0x8] sm:$0xf] %v704
        %721 = vst [vmem:[%s270 + $0xc] sm:$0xf] %v705
        %722 = vst [vmem:[%s270 + $0x10] sm:$0xf] %v706
        %723 = vst [vmem:[%s270 + $0x14] sm:$0xf] %v707
        %724 = vst [vmem:[%s270 + $0x18] sm:$0xf] %v708
        %725 = vst [vmem:[%s270 + $0x1c] sm:$0xf] %v709
        %s726 = sand.u32 %s159, 1
        %s727 = scalar_lea.sflag [#allocation4], %s726
        %s728 = sand.u32 %s159, 1
        %s729 = smul.addr %s728, 32
        %s730 = scalar_lea.vmem [#allocation5], %s729
        // Predicated region
        $region45: #{tpu_custom_call.1} parent=39 // pred_check
          %p731 = pneg %p169
        $region46: #{tpu_custom_call.1} parent=39 // pred_check_branch
          %733 = sbr.rel (%p731) target = $region48
        $region47: #{tpu_custom_call.1} parent=39 // pred_region
          %s734 = smul.u32 8, %s25
          %s736 = ssub.s32 512, 512
          %737 = vsyncadd %s727, %s736
          %s738 = smul.addr %s24, 8
          %s739 = sadd.s32 %s734, %s738
          %s740 = smul.addr %s739, 64
          %s741 = scalar_lea.hbm %s5, %s740
          %s742 = sshll.u32 %s730, 4
          %s743 = int_to_ptr.vmem [resolvable:$true] %s742
          %748 = dma.vmem_to_hbm [thread:$0]  %s743, 512, %s741, %s727, 64, 64, 4
        $region48: #{tpu_custom_call.1} parent=39 // pred_fallthru
          _
      $region40: #{tpu_custom_call.1} parent=5 // pred_fallthru
        _
      %p749 = scmp.le.s32.totalorder 2, %s15
      // Predicated region
      $region49: #{tpu_custom_call.1} parent=5 // pred_check
        %p750 = pneg %p749
      $region50: #{tpu_custom_call.1} parent=5 // pred_check_branch
        %752 = sbr.rel (%p750) target = $region52
      $region51: #{tpu_custom_call.1} parent=5 // pred_region
        %s753 = ssub.s32 %s15, 2
        // Predicated region
        $region53: #{tpu_custom_call.1} parent=51 // pred_check
          %p754 = pneg %p175
        $region54: #{tpu_custom_call.1} parent=51 // pred_check_branch
          %756 = sbr.rel (%p754) target = $region56
        $region55: #{tpu_custom_call.1} parent=51 // pred_region
          %s757 = sand.u32 %s160, 1
          %s758 = scalar_lea.sflag [#allocation4], %s757
          %s759 = sand.u32 %s160, 1
          %s760 = smul.addr %s759, 32
          %s761 = scalar_lea.vmem [#allocation5], %s760
          %762 = dma.done %s758, 512
        $region56: #{tpu_custom_call.1} parent=51 // pred_fallthru
          _
      $region52: #{tpu_custom_call.1} parent=5 // pred_fallthru
        _
    $region6: #{tpu_custom_call.1} parent=1 // loop_footer
      %s19 = sadd.s32 1, %s15
    $region7: #{tpu_custom_call.1} parent=1 // loop_footer_branch
      %14 = sbr.rel target = $region3
    $region8: #{tpu_custom_call.1} parent=1 // loop_exit
      _
    %763 = vsyncpa [#allocation3], 1
    %s764 = scalar_lea.sflag [#allocation3], 1
    %765 = vsyncpa %s764, 1
    %766 = vsyncpa [#allocation4], 1
    %s767 = scalar_lea.sflag [#allocation4], 1
    %768 = vsyncpa %s767, 1

</llo_original>
